<compile_context>
chip_gen: v5e
topology: v5e:2x2
jax: 0.10.0
libtpu: 0.0.40
codegen_flags: <defaults>
</compile_context>

<pallas_src>
import jax
import jax.numpy as jnp
import numpy as np
from jax.experimental import pallas as pl
from jax.experimental.pallas import tpu as pltpu


def _round_up(x, m):
    return ((x + m - 1) // m) * m


def _build_constants(nh, K, H, Dv):
    """Constant 0/1 matrices that push the awkward reductions / permutations onto
    the MXU (which is otherwise idle in this memory-bound kernel)."""
    KH, KN, KDv = K * H, K * nh, K * Dv
    i = np.arange(KN)

    # seg[h, kk*H + j, kk*nh + h] = 1 : H-reduction of (k * t_h), landing directly
    # in the PyTorch `.view(B, N, -1, K)` flat order (the .view quirk is free).
    seg = np.zeros((nh, KH, KN), np.float32)
    for h in range(nh):
        for kk in range(K):
            seg[h, kk * H:(kk + 1) * H, kk * nh + h] = 1.0

    # Softmax runs over each contiguous K-segment of the viewed row (i // K):
    # dmat broadcasts each segment's sum back across the segment.
    dmat = (i[:, None] // K == i[None, :] // K).astype(np.float32)            # (KN, KN)

    # output[d] = sum_c (sum_a attn[a, c]) * v[c, d]; head-sum (lanes with equal
    # i % K) and the spread across Dv lanes fused into one constant.
    c_of_lane = np.arange(KDv) // Dv
    m1 = ((i[:, None] % K) == c_of_lane[None, :]).astype(np.float32)          # (KN, KDv)

    # reduce (wsum * v) over the K axis.
    m2 = np.tile(np.eye(Dv, dtype=np.float32), (K, 1))                        # (KDv, Dv)

    # mask (given per viewed K-position c) broadcast across heads.
    mexp = (np.arange(K)[:, None] == (i[None, :] % K)).astype(np.float32)     # (K, KN)
    return seg, dmat, m1, m2, mexp


def _make_kernel(nh, K, H, Dv, with_mask):
    def kernel(*refs):
        if with_mask:
            (q_ref, k_ref, v_ref, w_ref, seg_ref, dmat_ref, m1_ref, m2_ref,
             b_ref, mexp_ref, m_ref, attn_ref, out_ref) = refs
        else:
            (q_ref, k_ref, v_ref, w_ref, seg_ref, dmat_ref, m1_ref, m2_ref,
             b_ref, attn_ref, out_ref) = refs

        f32 = jnp.float32
        q32 = q_ref[...].astype(f32)                           # (tbn, H)
        k2 = k_ref[...].astype(f32)                            # (tbn, K*H) lane-dense

        # (1) bilinear scores, all heads: q @ W_rep (MXU), full-lane VPU multiply
        #     against the k slab, then H-reduction + `.view` permutation via the
        #     constant seg matmul (MXU).  Bias folded in as a lane vector.
        flat = None
        for h in range(nh):
            t_h = jnp.dot(q32, w_ref[h], preferred_element_type=f32)          # (tbn, K*H)
            p_h = jnp.dot(k2 * t_h, seg_ref[h], preferred_element_type=f32)   # (tbn, K*nh)
            flat = p_h if flat is None else flat + p_h
        flat = flat + b_ref[...]                               # (1, K*nh) bias lane vector

        # (2) optional masking: (tbn, K) mask expanded over heads with one tiny
        #     constant matmul, then masked_fill with -1e9 (Python literal).
        if with_mask:
            m_rep = jnp.dot(m_ref[...].astype(f32), mexp_ref[...],
                            preferred_element_type=f32)        # (tbn, K*nh)
            flat = jnp.where(m_rep == 0.0, -1000000000.0, flat)

        # (3) softmax over each length-K segment, full width.  A single row-wide
        #     max is valid (the shift is uniform inside every segment); with the
        #     module's head-broadcast mask the all-masked case stays 1/K.
        mx = jnp.max(flat, axis=-1, keepdims=True)
        e = jnp.exp(flat - mx)
        denom = jnp.dot(e, dmat_ref[...], preferred_element_type=f32)          # segment sums
        pa = e / denom
        attn_ref[...] = pa.astype(attn_ref.dtype)

        # (4) output: head-sum + Dv-spread (m1, MXU), full-lane multiply with the
        #     v slab (VPU), reduce over K (m2, MXU).
        wrep = jnp.dot(pa, m1_ref[...], preferred_element_type=f32)            # (tbn, K*Dv)
        out = jnp.dot(wrep * v_ref[...].astype(f32), m2_ref[...],
                      preferred_element_type=f32)                              # (tbn, Dv)
        out_ref[...] = out.astype(out_ref.dtype)

    return kernel


def bilinear_attention(q, k, v, weight, bias, mask=None, block_rows=1024):
    """q: (B,N,1,H)  k: (B,N,K,H)  v: (B,N,K,Dv)
    weight: (n_head,H,H)  bias: (n_head,)  mask: broadcastable to (B,N,1,K) or None
    -> (output (B,N,Dv), attn (B,N,n_head,K))"""
    B, N, K, H = k.shape
    nh = weight.shape[0]
    Dv = v.shape[-1]
    BN = B * N
    KH, KN, KDv = K * H, K * nh, K * Dv
    out_dtype = jnp.result_type(q.dtype, k.dtype, v.dtype, weight.dtype)

    # Row tiling: biggest balanced tiles <= block_rows, multiple of 8 sublanes;
    # force >= 2 tiles for large BN so v7x's two TensorCores both get work.
    n_t = max(1, -(-BN // block_rows))
    if n_t == 1 and BN >= 1024:
        n_t = 2
    tbn = _round_up(-(-BN // n_t), 8)
    BN_p = _round_up(BN, tbn)
    n_tiles = BN_p // tbn
    pad = BN_p - BN

    q2 = q.reshape(BN, H)
    kslab = k.reshape(BN, KH)            # lane-dense k slab
    vslab = v.reshape(BN, KDv)           # lane-dense v slab
    if pad:
        q2 = jnp.pad(q2, ((0, pad), (0, 0)))
        kslab = jnp.pad(kslab, ((0, pad), (0, 0)))
        vslab = jnp.pad(vslab, ((0, pad), (0, 0)))

    # W_rep[h, i, kk*H + j] = weight[h, i, j] : q@W replicated across K so the
    # k-side H-reduction is a full-lane multiply + constant matmul.
    w_rep = jnp.tile(weight.astype(jnp.float32), (1, 1, K))          # (nh, H, K*H)
    b_row = jnp.tile(bias.astype(jnp.float32), K).reshape(1, KN)     # bias[i % nh]

    seg, dmat, m1, m2, mexp = _build_constants(nh, K, H, Dv)
    args = [q2, kslab, vslab, w_rep, jnp.asarray(seg), jnp.asarray(dmat),
            jnp.asarray(m1), jnp.asarray(m2), b_row]
    in_specs = [
        pl.BlockSpec((tbn, H), lambda i: (i, 0)),              # q rows
        pl.BlockSpec((tbn, KH), lambda i: (i, 0)),             # k rows (lane dense)
        pl.BlockSpec((tbn, KDv), lambda i: (i, 0)),            # v rows (lane dense)
        pl.BlockSpec((nh, H, KH), lambda i: (0, 0, 0)),        # W_rep (resident)
        pl.BlockSpec((nh, KH, KN), lambda i: (0, 0, 0)),       # seg (resident)
        pl.BlockSpec((KN, KN), lambda i: (0, 0)),              # softmax segment-sum
        pl.BlockSpec((KN, KDv), lambda i: (0, 0)),             # head-sum + Dv spread
        pl.BlockSpec((KDv, Dv), lambda i: (0, 0)),             # K reduction
        pl.BlockSpec((1, KN), lambda i: (0, 0)),               # bias lane vector
    ]

    with_mask = mask is not None
    if with_mask:
        # TODO(synk): per-head masks (shape (B,N,nh,K)) not supported; the module
        # broadcasts a (B,N,1,K)-style mask across heads, which is what we do here.
        m01 = (jnp.broadcast_to(mask, (B, N, 1, K)).reshape(BN, K) != 0).astype(jnp.float32)
        if pad:
            m01 = jnp.pad(m01, ((0, pad), (0, 0)), constant_values=1.0)
        args += [jnp.asarray(mexp), m01]
        in_specs += [
            pl.BlockSpec((K, KN), lambda i: (0, 0)),           # mask head-broadcast
            pl.BlockSpec((tbn, K), lambda i: (i, 0)),          # mask rows (K lanes only)
        ]

    attn_p, out_p = pl.pallas_call(
        _make_kernel(nh, K, H, Dv, with_mask),
        out_shape=(
            jax.ShapeDtypeStruct((BN_p, KN), out_dtype),       # attn, flat view order
            jax.ShapeDtypeStruct((BN_p, Dv), out_dtype),       # output
        ),
        grid=(n_tiles,),
        in_specs=in_specs,
        out_specs=(
            pl.BlockSpec((tbn, KN), lambda i: (i, 0)),
            pl.BlockSpec((tbn, Dv), lambda i: (i, 0)),
        ),
        compiler_params=pltpu.CompilerParams(
            dimension_semantics=("parallel",),
            vmem_limit_bytes=32 * 1024 * 1024,
        ),
    )(*args)

    attn = attn_p[:BN].reshape(B, N, nh, K)    # free reshape of the flat slab
    output = out_p[:BN].reshape(B, N, Dv)
    return output, attn


def _reference(q, k, v, weight, bias, mask=None):
    """Pure-JAX reference matching the PyTorch forward exactly."""
    B, N, K, H = k.shape
    nh = weight.shape[0]
    qe = jnp.broadcast_to(q.reshape(B, N, 1, H), (B, N, K, H)).reshape(-1, H)
    kf = k.reshape(-1, H)
    bil = jnp.einsum('mi,hij,mj->mh', qe, weight, kf) + bias      # (B*N*K, nh)
    attn = bil.reshape(B, N, nh, K)                               # raw reshape, like .view
    if mask is not None:
        attn = jnp.where(mask == 0, jnp.float32(-1000000000.0), attn)
    attn = jax.nn.softmax(attn, axis=-1)
    out = jnp.matmul(attn, v).sum(2)
    return out, attn


if __name__ == "__main__":
    B, N, Q, K, H = 2, 3, 1, 8, 32     # h_size = k_dim = 32
    n_head, Dv = 4, 16

    key = jax.random.PRNGKey(0)
    kq, kk_, kv, kw, kb, km = jax.random.split(key, 6)
    q = jax.random.normal(kq, (B, N, Q, H), jnp.float32)
    k = jax.random.normal(kk_, (B, N, K, H), jnp.float32)
    v = jax.random.normal(kv, (B, N, K, Dv), jnp.float32)

    # nn.Bilinear(k_dim, k_dim, n_head): weight (n_head, k_dim, k_dim), bias (n_head,)
    bound = 1.0 / np.sqrt(H)
    weight = jax.random.uniform(kw, (n_head, H, H), jnp.float32, -bound, bound)
    bias = jax.random.uniform(kb, (n_head,), jnp.float32, -bound, bound)

    # --- unmasked ------------------------------------------------------------
    output, attn = jax.block_until_ready(bilinear_attention(q, k, v, weight, bias))
    ref_out, ref_attn = _reference(q, k, v, weight, bias)
    np.testing.assert_allclose(np.asarray(output), np.asarray(ref_out), rtol=1e-4, atol=1e-4)
    np.testing.assert_allclose(np.asarray(attn), np.asarray(ref_attn), rtol=1e-4, atol=1e-4)

    # --- masked --------------------------------------------------------------
    mask = (jax.random.uniform(km, (B, N, 1, K)) > 0.3).astype(jnp.int32)
    out_m, attn_m = jax.block_until_ready(bilinear_attention(q, k, v, weight, bias, mask=mask))
    ref_out_m, ref_attn_m = _reference(q, k, v, weight, bias, mask=mask)
    np.testing.assert_allclose(np.asarray(out_m), np.asarray(ref_out_m), rtol=1e-4, atol=1e-4)
    np.testing.assert_allclose(np.asarray(attn_m), np.asarray(ref_attn_m), rtol=1e-4, atol=1e-4)

    # --- larger shape: exercises multi-tile grid + row padding ----------------
    B2, N2 = 4, 200
    ka, kb2, kc = jax.random.split(jax.random.PRNGKey(1), 3)
    q_l = jax.random.normal(ka, (B2, N2, Q, H), jnp.float32)
    k_l = jax.random.normal(kb2, (B2, N2, K, H), jnp.float32)
    v_l = jax.random.normal(kc, (B2, N2, K, Dv), jnp.float32)
    out_l, attn_l = jax.block_until_ready(
        bilinear_attention(q_l, k_l, v_l, weight, bias, block_rows=128))
    ref_out_l, ref_attn_l = _reference(q_l, k_l, v_l, weight, bias)
    np.testing.assert_allclose(np.asarray(out_l), np.asarray(ref_out_l), rtol=1e-4, atol=1e-4)
    np.testing.assert_allclose(np.asarray(attn_l), np.asarray(ref_attn_l), rtol=1e-4, atol=1e-4)

    print("KERNEL_OK")
</pallas_src>

<mosaic_0001>
module attributes {stable_mosaic.version = 11 : i64} {
  func.func @kernel(%arg0: i32, %arg1: memref<8x32xf32, #tpu.memory_space<vmem>>, %arg2: memref<8x256xf32, #tpu.memory_space<vmem>>, %arg3: memref<8x128xf32, #tpu.memory_space<vmem>>, %arg4: memref<4x32x256xf32, #tpu.memory_space<vmem>>, %arg5: memref<4x256x32xf32, #tpu.memory_space<vmem>>, %arg6: memref<32x32xf32, #tpu.memory_space<vmem>>, %arg7: memref<32x128xf32, #tpu.memory_space<vmem>>, %arg8: memref<128x16xf32, #tpu.memory_space<vmem>>, %arg9: memref<1x32xf32, #tpu.memory_space<vmem>>, %arg10: memref<8x32xf32, #tpu.memory_space<vmem>>, %arg11: memref<8x16xf32, #tpu.memory_space<vmem>>) attributes {dimension_semantics = [#tpu.dimension_semantics<parallel>], iteration_bounds = array<i64: 1>, scalar_prefetch = 0 : i64, scratch_operands = 0 : i64, tpu.core_type = #tpu.core_type<tc>, window_params = [{transform_indices = @transform_0, window_bounds = array<i64: 8, 32>}, {transform_indices = @transform_1, window_bounds = array<i64: 8, 256>}, {transform_indices = @transform_2, window_bounds = array<i64: 8, 128>}, {pipeline_mode = #tpu.pipeline_mode<synchronous>, transform_indices = @transform_3, window_bounds = array<i64: 4, 32, 256>}, {pipeline_mode = #tpu.pipeline_mode<synchronous>, transform_indices = @transform_4, window_bounds = array<i64: 4, 256, 32>}, {pipeline_mode = #tpu.pipeline_mode<synchronous>, transform_indices = @transform_5, window_bounds = array<i64: 32, 32>}, {pipeline_mode = #tpu.pipeline_mode<synchronous>, transform_indices = @transform_6, window_bounds = array<i64: 32, 128>}, {pipeline_mode = #tpu.pipeline_mode<synchronous>, transform_indices = @transform_7, window_bounds = array<i64: 128, 16>}, {pipeline_mode = #tpu.pipeline_mode<synchronous>, transform_indices = @transform_8, window_bounds = array<i64: 1, 32>}, {transform_indices = @transform_9, window_bounds = array<i64: 8, 32>}, {transform_indices = @transform_10, window_bounds = array<i64: 8, 16>}]} {
    %c0 = arith.constant 0 : index
    %c0_0 = arith.constant 0 : index
    %0 = vector.load %arg1[%c0, %c0_0] : memref<8x32xf32, #tpu.memory_space<vmem>>, vector<8x32xf32>
    %c0_1 = arith.constant 0 : index
    %c0_2 = arith.constant 0 : index
    %1 = vector.load %arg2[%c0_1, %c0_2] : memref<8x256xf32, #tpu.memory_space<vmem>>, vector<8x256xf32>
    %c0_3 = arith.constant 0 : index
    %c0_4 = arith.constant 0 : index
    %c0_5 = arith.constant 0 : index
    %2 = vector.load %arg4[%c0_3, %c0_4, %c0_5] : memref<4x32x256xf32, #tpu.memory_space<vmem>>, vector<1x32x256xf32>
    %3 = vector.shape_cast %2 : vector<1x32x256xf32> to vector<32x256xf32>
    %cst = arith.constant dense<0.000000e+00> : vector<8x256xf32>
    %4 = tpu.matmul %0, %3, %cst {dimension_numbers = #tpu.dot_dimension_numbers<[1], [0], [0], [1], [0, 0, 1, 1], [], []>} : vector<8x32xf32>, vector<32x256xf32>, vector<8x256xf32> -> vector<8x256xf32>
    %5 = arith.mulf %1, %4 : vector<8x256xf32>
    %c0_6 = arith.constant 0 : index
    %c0_7 = arith.constant 0 : index
    %c0_8 = arith.constant 0 : index
    %6 = vector.load %arg5[%c0_6, %c0_7, %c0_8] : memref<4x256x32xf32, #tpu.memory_space<vmem>>, vector<1x256x32xf32>
    %7 = vector.shape_cast %6 : vector<1x256x32xf32> to vector<256x32xf32>
    %cst_9 = arith.constant dense<0.000000e+00> : vector<8x32xf32>
    %8 = tpu.matmul %5, %7, %cst_9 {dimension_numbers = #tpu.dot_dimension_numbers<[1], [0], [0], [1], [0, 0, 1, 1], [], []>} : vector<8x256xf32>, vector<256x32xf32>, vector<8x32xf32> -> vector<8x32xf32>
    %c1 = arith.constant 1 : index
    %c0_10 = arith.constant 0 : index
    %c0_11 = arith.constant 0 : index
    %9 = vector.load %arg4[%c1, %c0_10, %c0_11] : memref<4x32x256xf32, #tpu.memory_space<vmem>>, vector<1x32x256xf32>
    %10 = vector.shape_cast %9 : vector<1x32x256xf32> to vector<32x256xf32>
    %cst_12 = arith.constant dense<0.000000e+00> : vector<8x256xf32>
    %11 = tpu.matmul %0, %10, %cst_12 {dimension_numbers = #tpu.dot_dimension_numbers<[1], [0], [0], [1], [0, 0, 1, 1], [], []>} : vector<8x32xf32>, vector<32x256xf32>, vector<8x256xf32> -> vector<8x256xf32>
    %12 = arith.mulf %1, %11 : vector<8x256xf32>
    %c1_13 = arith.constant 1 : index
    %c0_14 = arith.constant 0 : index
    %c0_15 = arith.constant 0 : index
    %13 = vector.load %arg5[%c1_13, %c0_14, %c0_15] : memref<4x256x32xf32, #tpu.memory_space<vmem>>, vector<1x256x32xf32>
    %14 = vector.shape_cast %13 : vector<1x256x32xf32> to vector<256x32xf32>
    %cst_16 = arith.constant dense<0.000000e+00> : vector<8x32xf32>
    %15 = tpu.matmul %12, %14, %cst_16 {dimension_numbers = #tpu.dot_dimension_numbers<[1], [0], [0], [1], [0, 0, 1, 1], [], []>} : vector<8x256xf32>, vector<256x32xf32>, vector<8x32xf32> -> vector<8x32xf32>
    %16 = arith.addf %8, %15 : vector<8x32xf32>
    %c2 = arith.constant 2 : index
    %c0_17 = arith.constant 0 : index
    %c0_18 = arith.constant 0 : index
    %17 = vector.load %arg4[%c2, %c0_17, %c0_18] : memref<4x32x256xf32, #tpu.memory_space<vmem>>, vector<1x32x256xf32>
    %18 = vector.shape_cast %17 : vector<1x32x256xf32> to vector<32x256xf32>
    %cst_19 = arith.constant dense<0.000000e+00> : vector<8x256xf32>
    %19 = tpu.matmul %0, %18, %cst_19 {dimension_numbers = #tpu.dot_dimension_numbers<[1], [0], [0], [1], [0, 0, 1, 1], [], []>} : vector<8x32xf32>, vector<32x256xf32>, vector<8x256xf32> -> vector<8x256xf32>
    %20 = arith.mulf %1, %19 : vector<8x256xf32>
    %c2_20 = arith.constant 2 : index
    %c0_21 = arith.constant 0 : index
    %c0_22 = arith.constant 0 : index
    %21 = vector.load %arg5[%c2_20, %c0_21, %c0_22] : memref<4x256x32xf32, #tpu.memory_space<vmem>>, vector<1x256x32xf32>
    %22 = vector.shape_cast %21 : vector<1x256x32xf32> to vector<256x32xf32>
    %cst_23 = arith.constant dense<0.000000e+00> : vector<8x32xf32>
    %23 = tpu.matmul %20, %22, %cst_23 {dimension_numbers = #tpu.dot_dimension_numbers<[1], [0], [0], [1], [0, 0, 1, 1], [], []>} : vector<8x256xf32>, vector<256x32xf32>, vector<8x32xf32> -> vector<8x32xf32>
    %24 = arith.addf %16, %23 : vector<8x32xf32>
    %c3 = arith.constant 3 : index
    %c0_24 = arith.constant 0 : index
    %c0_25 = arith.constant 0 : index
    %25 = vector.load %arg4[%c3, %c0_24, %c0_25] : memref<4x32x256xf32, #tpu.memory_space<vmem>>, vector<1x32x256xf32>
    %26 = vector.shape_cast %25 : vector<1x32x256xf32> to vector<32x256xf32>
    %cst_26 = arith.constant dense<0.000000e+00> : vector<8x256xf32>
    %27 = tpu.matmul %0, %26, %cst_26 {dimension_numbers = #tpu.dot_dimension_numbers<[1], [0], [0], [1], [0, 0, 1, 1], [], []>} : vector<8x32xf32>, vector<32x256xf32>, vector<8x256xf32> -> vector<8x256xf32>
    %28 = arith.mulf %1, %27 : vector<8x256xf32>
    %c3_27 = arith.constant 3 : index
    %c0_28 = arith.constant 0 : index
    %c0_29 = arith.constant 0 : index
    %29 = vector.load %arg5[%c3_27, %c0_28, %c0_29] : memref<4x256x32xf32, #tpu.memory_space<vmem>>, vector<1x256x32xf32>
    %30 = vector.shape_cast %29 : vector<1x256x32xf32> to vector<256x32xf32>
    %cst_30 = arith.constant dense<0.000000e+00> : vector<8x32xf32>
    %31 = tpu.matmul %28, %30, %cst_30 {dimension_numbers = #tpu.dot_dimension_numbers<[1], [0], [0], [1], [0, 0, 1, 1], [], []>} : vector<8x256xf32>, vector<256x32xf32>, vector<8x32xf32> -> vector<8x32xf32>
    %32 = arith.addf %24, %31 : vector<8x32xf32>
    %c0_31 = arith.constant 0 : index
    %c0_32 = arith.constant 0 : index
    %33 = vector.load %arg9[%c0_31, %c0_32] : memref<1x32xf32, #tpu.memory_space<vmem>>, vector<1x32xf32>
    %34 = vector.broadcast %33 : vector<1x32xf32> to vector<8x32xf32>
    %35 = arith.addf %32, %34 : vector<8x32xf32>
    %cst_33 = arith.constant dense<0xFF800000> : vector<8xf32>
    %36 = vector.multi_reduction <maximumf>, %35, %cst_33 [1] : vector<8x32xf32> to vector<8xf32>
    %37 = vector.shape_cast %36 : vector<8xf32> to vector<8x1xf32>
    %38 = vector.broadcast %37 : vector<8x1xf32> to vector<8x32xf32>
    %39 = arith.subf %35, %38 : vector<8x32xf32>
    %40 = math.exp %39 : vector<8x32xf32>
    %c0_34 = arith.constant 0 : index
    %c0_35 = arith.constant 0 : index
    %41 = vector.load %arg6[%c0_34, %c0_35] : memref<32x32xf32, #tpu.memory_space<vmem>>, vector<32x32xf32>
    %cst_36 = arith.constant dense<0.000000e+00> : vector<8x32xf32>
    %42 = tpu.matmul %40, %41, %cst_36 {dimension_numbers = #tpu.dot_dimension_numbers<[1], [0], [0], [1], [0, 0, 1, 1], [], []>} : vector<8x32xf32>, vector<32x32xf32>, vector<8x32xf32> -> vector<8x32xf32>
    %43 = arith.divf %40, %42 : vector<8x32xf32>
    %c0_37 = arith.constant 0 : index
    %c0_38 = arith.constant 0 : index
    %44 = vector.load %arg10[%c0_37, %c0_38] : memref<8x32xf32, #tpu.memory_space<vmem>>, vector<8x32xf32>
    tpu.vector_store %arg10[%c0_37, %c0_38], %43 {strides = array<i32>} : memref<8x32xf32, #tpu.memory_space<vmem>>, vector<8x32xf32>,
    %c0_39 = arith.constant 0 : index
    %c0_40 = arith.constant 0 : index
    %45 = vector.load %arg7[%c0_39, %c0_40] : memref<32x128xf32, #tpu.memory_space<vmem>>, vector<32x128xf32>
    %cst_41 = arith.constant dense<0.000000e+00> : vector<8x128xf32>
    %46 = tpu.matmul %43, %45, %cst_41 {dimension_numbers = #tpu.dot_dimension_numbers<[1], [0], [0], [1], [0, 0, 1, 1], [], []>} : vector<8x32xf32>, vector<32x128xf32>, vector<8x128xf32> -> vector<8x128xf32>
    %c0_42 = arith.constant 0 : index
    %c0_43 = arith.constant 0 : index
    %47 = vector.load %arg3[%c0_42, %c0_43] : memref<8x128xf32, #tpu.memory_space<vmem>>, vector<8x128xf32>
    %48 = arith.mulf %46, %47 : vector<8x128xf32>
    %c0_44 = arith.constant 0 : index
    %c0_45 = arith.constant 0 : index
    %49 = vector.load %arg8[%c0_44, %c0_45] : memref<128x16xf32, #tpu.memory_space<vmem>>, vector<128x16xf32>
    %cst_46 = arith.constant dense<0.000000e+00> : vector<8x16xf32>
    %50 = tpu.matmul %48, %49, %cst_46 {dimension_numbers = #tpu.dot_dimension_numbers<[1], [0], [0], [1], [0, 0, 1, 1], [], []>} : vector<8x128xf32>, vector<128x16xf32>, vector<8x16xf32> -> vector<8x16xf32>
    %c0_47 = arith.constant 0 : index
    %c0_48 = arith.constant 0 : index
    %51 = vector.load %arg11[%c0_47, %c0_48] : memref<8x16xf32, #tpu.memory_space<vmem>>, vector<8x16xf32>
    tpu.vector_store %arg11[%c0_47, %c0_48], %50 {strides = array<i32>} : memref<8x16xf32, #tpu.memory_space<vmem>>, vector<8x16xf32>,
    return
  }
  func.func @transform_0(%arg0: i32) -> (i32, i32) {
    %c0_i32 = arith.constant 0 : i32
    %c0_i32_0 = arith.constant 0 : i32
    return %arg0, %c0_i32 : i32, i32
  }
  func.func @transform_1(%arg0: i32) -> (i32, i32) {
    %c0_i32 = arith.constant 0 : i32
    %c0_i32_0 = arith.constant 0 : i32
    return %arg0, %c0_i32 : i32, i32
  }
  func.func @transform_2(%arg0: i32) -> (i32, i32) {
    %c0_i32 = arith.constant 0 : i32
    %c0_i32_0 = arith.constant 0 : i32
    return %arg0, %c0_i32 : i32, i32
  }
  func.func @transform_3(%arg0: i32) -> (i32, i32, i32) {
    %c0_i32 = arith.constant 0 : i32
    %c0_i32_0 = arith.constant 0 : i32
    %c0_i32_1 = arith.constant 0 : i32
    %c0_i32_2 = arith.constant 0 : i32
    return %c0_i32, %c0_i32_0, %c0_i32_1 : i32, i32, i32
  }
  func.func @transform_4(%arg0: i32) -> (i32, i32, i32) {
    %c0_i32 = arith.constant 0 : i32
    %c0_i32_0 = arith.constant 0 : i32
    %c0_i32_1 = arith.constant 0 : i32
    %c0_i32_2 = arith.constant 0 : i32
    return %c0_i32, %c0_i32_0, %c0_i32_1 : i32, i32, i32
  }
  func.func @transform_5(%arg0: i32) -> (i32, i32) {
    %c0_i32 = arith.constant 0 : i32
    %c0_i32_0 = arith.constant 0 : i32
    %c0_i32_1 = arith.constant 0 : i32
    return %c0_i32, %c0_i32_0 : i32, i32
  }
  func.func @transform_6(%arg0: i32) -> (i32, i32) {
    %c0_i32 = arith.constant 0 : i32
    %c0_i32_0 = arith.constant 0 : i32
    %c0_i32_1 = arith.constant 0 : i32
    return %c0_i32, %c0_i32_0 : i32, i32
  }
  func.func @transform_7(%arg0: i32) -> (i32, i32) {
    %c0_i32 = arith.constant 0 : i32
    %c0_i32_0 = arith.constant 0 : i32
    %c0_i32_1 = arith.constant 0 : i32
    return %c0_i32, %c0_i32_0 : i32, i32
  }
  func.func @transform_8(%arg0: i32) -> (i32, i32) {
    %c0_i32 = arith.constant 0 : i32
    %c0_i32_0 = arith.constant 0 : i32
    %c0_i32_1 = arith.constant 0 : i32
    return %c0_i32, %c0_i32_0 : i32, i32
  }
  func.func @transform_9(%arg0: i32) -> (i32, i32) {
    %c0_i32 = arith.constant 0 : i32
    %c0_i32_0 = arith.constant 0 : i32
    return %arg0, %c0_i32 : i32, i32
  }
  func.func @transform_10(%arg0: i32) -> (i32, i32) {
    %c0_i32 = arith.constant 0 : i32
    %c0_i32_0 = arith.constant 0 : i32
    return %arg0, %c0_i32 : i32, i32
  }
}

</mosaic_0001>

<llo_original>
// kernel: tpu_custom_call.1
$region0: #{tpu_custom_call.1}
  #allocation0 [shape = 'u32[]', space=smem, size = 0x4, offset = 0x4, fixed_abs, tag = 'smem constant byte address 0x4 - core index']
  #allocation1 [shape = 'u32[72,128]{1,0:T(1,128)}', space=vmem, size = 0x9000, scoped, tag = 'internal scratch']
  %s0 = inlined_call_operand.vmem [shape: f32[8,32], index: 0, kind: input, shape index: {}]
  %s1 = inlined_call_operand.vmem [shape: f32[8,256], index: 1, kind: input, shape index: {}]
  %s2 = inlined_call_operand.vmem [shape: f32[8,128], index: 2, kind: input, shape index: {}]
  %s3 = inlined_call_operand.vmem [shape: f32[4,32,256], index: 3, kind: input, shape index: {}]
  %s4 = inlined_call_operand.vmem [shape: f32[4,256,32], index: 4, kind: input, shape index: {}]
  %s5 = inlined_call_operand.vmem [shape: f32[32,32], index: 5, kind: input, shape index: {}]
  %s6 = inlined_call_operand.vmem [shape: f32[32,128], index: 6, kind: input, shape index: {}]
  %s7 = inlined_call_operand.vmem [shape: f32[128,16], index: 7, kind: input, shape index: {}]
  %s8 = inlined_call_operand.vmem [shape: f32[1,32], index: 8, kind: input, shape index: {}]
  %s9 = inlined_call_operand.hbm [shape: f32[8,32], index: 9, kind: output, shape index: {0}]
  %s10 = inlined_call_operand.hbm [shape: f32[8,16], index: 10, kind: output, shape index: {1}]
  %11 = xla_tuple %s9, %s10
  %s12 = sld [smem:[#allocation0]]
  $region54: #{tpu_custom_call.1} parent=0
    _
  %s14 = ssub.s32 1, %s12
  %s15 = scalar_select 0, %s14, %s12
  $region1: #{tpu_custom_call.1} parent=0
    #allocation2 [shape = 'u8[4096]{0}', space=vmem, size = 0x1000, scoped, tag = 'output window, operand 0, single buffered']
    #allocation3 [shape = 's32[1]{0}', space=sflag, size = 0x4, scoped, tag = 'scoped memory for tpu_custom_call.1']
    #allocation4 [shape = 'u8[4096]{0}', space=vmem, size = 0x1000, scoped, tag = 'output window, operand 1, single buffered']
    #allocation5 [shape = 's32[1]{0}', space=sflag, size = 0x4, scoped, tag = 'scoped memory for tpu_custom_call.1']
    %16 = vsyncpa [#allocation3], 0
    %17 = vsyncpa [#allocation5], 0
    // Predicated region
    $region2: #{tpu_custom_call.1} parent=1 // pred_check
      _
    $region3: #{tpu_custom_call.1} parent=1 // pred_check_branch
      %19 = sbr.rel (0) target = $region5
    $region4: #{tpu_custom_call.1} parent=1 // pred_region
      _
    $region5: #{tpu_custom_call.1} parent=1 // pred_fallthru
      _
    // Predicated region
    $region6: #{tpu_custom_call.1} parent=1 // pred_check
      _
    $region7: #{tpu_custom_call.1} parent=1 // pred_check_branch
      %21 = sbr.rel (0) target = $region9
    $region8: #{tpu_custom_call.1} parent=1 // pred_region
      _
    $region9: #{tpu_custom_call.1} parent=1 // pred_fallthru
      _
    // Predicated region
    $region10: #{tpu_custom_call.1} parent=1 // pred_check
      _
    $region11: #{tpu_custom_call.1} parent=1 // pred_check_branch
      %23 = sbr.rel (0) target = $region13
    $region12: #{tpu_custom_call.1} parent=1 // pred_region
      _
    $region13: #{tpu_custom_call.1} parent=1 // pred_fallthru
      _
    // Predicated region
    $region14: #{tpu_custom_call.1} parent=1 // pred_check
      _
    $region15: #{tpu_custom_call.1} parent=1 // pred_check_branch
      %25 = sbr.rel (0) target = $region17
    $region16: #{tpu_custom_call.1} parent=1 // pred_region
      _
    $region17: #{tpu_custom_call.1} parent=1 // pred_fallthru
      _
    // Predicated region
    $region18: #{tpu_custom_call.1} parent=1 // pred_check
      _
    $region19: #{tpu_custom_call.1} parent=1 // pred_check_branch
      %27 = sbr.rel (0) target = $region21
    $region20: #{tpu_custom_call.1} parent=1 // pred_region
      _
    $region21: #{tpu_custom_call.1} parent=1 // pred_fallthru
      _
    // Predicated region
    $region22: #{tpu_custom_call.1} parent=1 // pred_check
      _
    $region23: #{tpu_custom_call.1} parent=1 // pred_check_branch
      %29 = sbr.rel (0) target = $region25
    $region24: #{tpu_custom_call.1} parent=1 // pred_region
      _
    $region25: #{tpu_custom_call.1} parent=1 // pred_fallthru
      _
    // Predicated region
    $region26: #{tpu_custom_call.1} parent=1 // pred_check
      _
    $region27: #{tpu_custom_call.1} parent=1 // pred_check_branch
      %31 = sbr.rel (0) target = $region29
    $region28: #{tpu_custom_call.1} parent=1 // pred_region
      _
    $region29: #{tpu_custom_call.1} parent=1 // pred_fallthru
      _
    // Predicated region
    $region30: #{tpu_custom_call.1} parent=1 // pred_check
      _
    $region31: #{tpu_custom_call.1} parent=1 // pred_check_branch
      %33 = sbr.rel (0) target = $region33
    $region32: #{tpu_custom_call.1} parent=1 // pred_region
      _
    $region33: #{tpu_custom_call.1} parent=1 // pred_fallthru
      _
    // Predicated region
    $region34: #{tpu_custom_call.1} parent=1 // pred_check
      _
    $region35: #{tpu_custom_call.1} parent=1 // pred_check_branch
      %35 = sbr.rel (0) target = $region37
    $region36: #{tpu_custom_call.1} parent=1 // pred_region
      _
    $region37: #{tpu_custom_call.1} parent=1 // pred_fallthru
      _
    %v36 = vld [vmem:[%s0] sm:$0xff]
    %v37 = vld [vmem:[%s1] sm:$0xff]
    %v38 = vld [vmem:[%s1 + $0x8] sm:$0xff]
    %v39 = vld [vmem:[%s3] sm:$0xff]
    %v40 = vld [vmem:[%s3 + $0x8] sm:$0xff]
    %v41 = vld [vmem:[%s3 + $0x10] sm:$0xff]
    %v42 = vld [vmem:[%s3 + $0x18] sm:$0xff]
    %v43 = vld [vmem:[%s3 + $0x20] sm:$0xff]
    %v44 = vld [vmem:[%s3 + $0x28] sm:$0xff]
    %v45 = vld [vmem:[%s3 + $0x30] sm:$0xff]
    %v46 = vld [vmem:[%s3 + $0x38] sm:$0xff]
    %vm47 = vcmask 261120
    %v49 = vsel %vm47, %v36, 0
    %51 = vmatpush.msra.mxu0 0.0
    %52 = vmatpush.msra.mxu0 0.0
    %53 = vmatpush.msra.mxu0 0.0
    %54 = vmatpush.msra.mxu0 0.0
    %55 = vmatpush.msra.mxu0 0.0
    %56 = vmatpush.msra.mxu0 0.0
    %57 = vmatpush.msra.mxu0 0.0
    %58 = vmatpush.msra.mxu0 0.0
    %59 = vmatpush.msra.mxu0 0.0
    %60 = vmatpush.msra.mxu0 0.0
    %61 = vmatpush.msra.mxu0 0.0
    %62 = vmatpush.msra.mxu0 0.0
    %63 = vmatpush.msra.mxu0 %v45
    %64 = vmatpush.msra.mxu0 %v43
    %65 = vmatpush.msra.mxu0 %v41
    %66 = vmatpush.msra.mxu0 %v39
    %67 = vmatmul.f32.gmra.mxu0 %v49
    %v68 = vpop.f32.mrf.mxu0
    %v69 = vadd.f32 0.0, %v68
    %70 = vdwg.mxu0
    %71 = vmatpush.msra.mxu0 0.0
    %72 = vmatpush.msra.mxu0 0.0
    %73 = vmatpush.msra.mxu0 0.0
    %74 = vmatpush.msra.mxu0 0.0
    %75 = vmatpush.msra.mxu0 0.0
    %76 = vmatpush.msra.mxu0 0.0
    %77 = vmatpush.msra.mxu0 0.0
    %78 = vmatpush.msra.mxu0 0.0
    %79 = vmatpush.msra.mxu0 0.0
    %80 = vmatpush.msra.mxu0 0.0
    %81 = vmatpush.msra.mxu0 0.0
    %82 = vmatpush.msra.mxu0 0.0
    %83 = vmatpush.msra.mxu0 %v46
    %84 = vmatpush.msra.mxu0 %v44
    %85 = vmatpush.msra.mxu0 %v42
    %86 = vmatpush.msra.mxu0 %v40
    %87 = vmatmul.f32.gmra.mxu0 %v49
    %v88 = vpop.f32.mrf.mxu0
    %v89 = vadd.f32 0.0, %v88
    %90 = vdwg.mxu0
    %v91 = vmul.f32 %v37, %v69
    %v92 = vmul.f32 %v38, %v89
    %v93 = vld [vmem:[%s4] sm:$0xff]
    %v94 = vld [vmem:[%s4 + $0x8] sm:$0xff]
    %v95 = vld [vmem:[%s4 + $0x10] sm:$0xff]
    %v96 = vld [vmem:[%s4 + $0x18] sm:$0xff]
    %v97 = vld [vmem:[%s4 + $0x20] sm:$0xff]
    %v98 = vld [vmem:[%s4 + $0x28] sm:$0xff]
    %v99 = vld [vmem:[%s4 + $0x30] sm:$0xff]
    %v100 = vld [vmem:[%s4 + $0x38] sm:$0xff]
    %v101 = vld [vmem:[%s4 + $0x40] sm:$0xff]
    %v102 = vld [vmem:[%s4 + $0x48] sm:$0xff]
    %v103 = vld [vmem:[%s4 + $0x50] sm:$0xff]
    %v104 = vld [vmem:[%s4 + $0x58] sm:$0xff]
    %v105 = vld [vmem:[%s4 + $0x60] sm:$0xff]
    %v106 = vld [vmem:[%s4 + $0x68] sm:$0xff]
    %v107 = vld [vmem:[%s4 + $0x70] sm:$0xff]
    %v108 = vld [vmem:[%s4 + $0x78] sm:$0xff]
    %v109 = vld [vmem:[%s4 + $0x80] sm:$0xff]
    %v110 = vld [vmem:[%s4 + $0x88] sm:$0xff]
    %v111 = vld [vmem:[%s4 + $0x90] sm:$0xff]
    %v112 = vld [vmem:[%s4 + $0x98] sm:$0xff]
    %v113 = vld [vmem:[%s4 + $0xa0] sm:$0xff]
    %v114 = vld [vmem:[%s4 + $0xa8] sm:$0xff]
    %v115 = vld [vmem:[%s4 + $0xb0] sm:$0xff]
    %v116 = vld [vmem:[%s4 + $0xb8] sm:$0xff]
    %v117 = vld [vmem:[%s4 + $0xc0] sm:$0xff]
    %v118 = vld [vmem:[%s4 + $0xc8] sm:$0xff]
    %v119 = vld [vmem:[%s4 + $0xd0] sm:$0xff]
    %v120 = vld [vmem:[%s4 + $0xd8] sm:$0xff]
    %v121 = vld [vmem:[%s4 + $0xe0] sm:$0xff]
    %v122 = vld [vmem:[%s4 + $0xe8] sm:$0xff]
    %v123 = vld [vmem:[%s4 + $0xf0] sm:$0xff]
    %v124 = vld [vmem:[%s4 + $0xf8] sm:$0xff]
    %s125 = scalar_lea.vmem %s3, 64
    %v126 = vld [vmem:[%s125] sm:$0xff]
    %v127 = vld [vmem:[%s125 + $0x8] sm:$0xff]
    %v128 = vld [vmem:[%s125 + $0x10] sm:$0xff]
    %v129 = vld [vmem:[%s125 + $0x18] sm:$0xff]
    %v130 = vld [vmem:[%s125 + $0x20] sm:$0xff]
    %v131 = vld [vmem:[%s125 + $0x28] sm:$0xff]
    %v132 = vld [vmem:[%s125 + $0x30] sm:$0xff]
    %v133 = vld [vmem:[%s125 + $0x38] sm:$0xff]
    %134 = vmatpush.msra.mxu0 0.0
    %135 = vmatpush.msra.mxu0 0.0
    %136 = vmatpush.msra.mxu0 0.0
    %137 = vmatpush.msra.mxu0 0.0
    %138 = vmatpush.msra.mxu0 0.0
    %139 = vmatpush.msra.mxu0 0.0
    %140 = vmatpush.msra.mxu0 0.0
    %141 = vmatpush.msra.mxu0 0.0
    %142 = vmatpush.msra.mxu0 0.0
    %143 = vmatpush.msra.mxu0 0.0
    %144 = vmatpush.msra.mxu0 0.0
    %145 = vmatpush.msra.mxu0 0.0
    %146 = vmatpush.msra.mxu0 %v132
    %147 = vmatpush.msra.mxu0 %v130
    %148 = vmatpush.msra.mxu0 %v128
    %149 = vmatpush.msra.mxu0 %v126
    %150 = vmatmul.f32.gmra.mxu0 %v49
    %v151 = vpop.f32.mrf.mxu0
    %v152 = vadd.f32 0.0, %v151
    %153 = vdwg.mxu0
    %154 = vmatpush.msra.mxu0 0.0
    %155 = vmatpush.msra.mxu0 0.0
    %156 = vmatpush.msra.mxu0 0.0
    %157 = vmatpush.msra.mxu0 0.0
    %158 = vmatpush.msra.mxu0 0.0
    %159 = vmatpush.msra.mxu0 0.0
    %160 = vmatpush.msra.mxu0 0.0
    %161 = vmatpush.msra.mxu0 0.0
    %162 = vmatpush.msra.mxu0 0.0
    %163 = vmatpush.msra.mxu0 0.0
    %164 = vmatpush.msra.mxu0 0.0
    %165 = vmatpush.msra.mxu0 0.0
    %166 = vmatpush.msra.mxu0 %v133
    %167 = vmatpush.msra.mxu0 %v131
    %168 = vmatpush.msra.mxu0 %v129
    %169 = vmatpush.msra.mxu0 %v127
    %170 = vmatmul.f32.gmra.mxu0 %v49
    %v171 = vpop.f32.mrf.mxu0
    %v172 = vadd.f32 0.0, %v171
    %173 = vdwg.mxu0
    %v174 = vmul.f32 %v37, %v152
    %v175 = vmul.f32 %v38, %v172
    %s176 = scalar_lea.vmem %s4, 256
    %v177 = vld [vmem:[%s176] sm:$0xff]
    %v178 = vld [vmem:[%s176 + $0x8] sm:$0xff]
    %v179 = vld [vmem:[%s176 + $0x10] sm:$0xff]
    %v180 = vld [vmem:[%s176 + $0x18] sm:$0xff]
    %v181 = vld [vmem:[%s176 + $0x20] sm:$0xff]
    %v182 = vld [vmem:[%s176 + $0x28] sm:$0xff]
    %v183 = vld [vmem:[%s176 + $0x30] sm:$0xff]
    %v184 = vld [vmem:[%s176 + $0x38] sm:$0xff]
    %v185 = vld [vmem:[%s176 + $0x40] sm:$0xff]
    %v186 = vld [vmem:[%s176 + $0x48] sm:$0xff]
    %v187 = vld [vmem:[%s176 + $0x50] sm:$0xff]
    %v188 = vld [vmem:[%s176 + $0x58] sm:$0xff]
    %v189 = vld [vmem:[%s176 + $0x60] sm:$0xff]
    %v190 = vld [vmem:[%s176 + $0x68] sm:$0xff]
    %v191 = vld [vmem:[%s176 + $0x70] sm:$0xff]
    %v192 = vld [vmem:[%s176 + $0x78] sm:$0xff]
    %v193 = vld [vmem:[%s176 + $0x80] sm:$0xff]
    %v194 = vld [vmem:[%s176 + $0x88] sm:$0xff]
    %v195 = vld [vmem:[%s176 + $0x90] sm:$0xff]
    %v196 = vld [vmem:[%s176 + $0x98] sm:$0xff]
    %v197 = vld [vmem:[%s176 + $0xa0] sm:$0xff]
    %v198 = vld [vmem:[%s176 + $0xa8] sm:$0xff]
    %v199 = vld [vmem:[%s176 + $0xb0] sm:$0xff]
    %v200 = vld [vmem:[%s176 + $0xb8] sm:$0xff]
    %v201 = vld [vmem:[%s176 + $0xc0] sm:$0xff]
    %v202 = vld [vmem:[%s176 + $0xc8] sm:$0xff]
    %v203 = vld [vmem:[%s176 + $0xd0] sm:$0xff]
    %v204 = vld [vmem:[%s176 + $0xd8] sm:$0xff]
    %v205 = vld [vmem:[%s176 + $0xe0] sm:$0xff]
    %v206 = vld [vmem:[%s176 + $0xe8] sm:$0xff]
    %v207 = vld [vmem:[%s176 + $0xf0] sm:$0xff]
    %v208 = vld [vmem:[%s176 + $0xf8] sm:$0xff]
    %209 = vmatpush.msra.mxu0 %v192
    %210 = vmatpush.msra.mxu0 %v191
    %211 = vmatpush.msra.mxu0 %v190
    %212 = vmatpush.msra.mxu0 %v189
    %213 = vmatpush.msra.mxu0 %v188
    %214 = vmatpush.msra.mxu0 %v187
    %215 = vmatpush.msra.mxu0 %v186
    %216 = vmatpush.msra.mxu0 %v185
    %217 = vmatpush.msra.mxu0 %v184
    %218 = vmatpush.msra.mxu0 %v183
    %219 = vmatpush.msra.mxu0 %v182
    %220 = vmatpush.msra.mxu0 %v181
    %221 = vmatpush.msra.mxu0 %v180
    %222 = vmatpush.msra.mxu0 %v179
    %223 = vmatpush.msra.mxu0 %v178
    %224 = vmatpush.msra.mxu0 %v177
    %225 = vmatmul.f32.gmra.mxu0 %v174
    %v226 = vpop.f32.mrf.mxu0
    %v227 = vadd.f32 0.0, %v226
    %228 = vdwg.mxu0
    %229 = vmatpush.msra.mxu0 %v208
    %230 = vmatpush.msra.mxu0 %v207
    %231 = vmatpush.msra.mxu0 %v206
    %232 = vmatpush.msra.mxu0 %v205
    %233 = vmatpush.msra.mxu0 %v204
    %234 = vmatpush.msra.mxu0 %v203
    %235 = vmatpush.msra.mxu0 %v202
    %236 = vmatpush.msra.mxu0 %v201
    %237 = vmatpush.msra.mxu0 %v200
    %238 = vmatpush.msra.mxu0 %v199
    %239 = vmatpush.msra.mxu0 %v198
    %240 = vmatpush.msra.mxu0 %v197
    %241 = vmatpush.msra.mxu0 %v196
    %242 = vmatpush.msra.mxu0 %v195
    %243 = vmatpush.msra.mxu0 %v194
    %244 = vmatpush.msra.mxu0 %v193
    %245 = vmatmul.f32.gmra.mxu0 %v175
    %v246 = vpop.f32.mrf.mxu0
    %v247 = vadd.f32 %v227, %v246
    %248 = vdwg.mxu0
    %249 = vmatpush.msra.mxu0 %v108
    %250 = vmatpush.msra.mxu0 %v107
    %251 = vmatpush.msra.mxu0 %v106
    %252 = vmatpush.msra.mxu0 %v105
    %253 = vmatpush.msra.mxu0 %v104
    %254 = vmatpush.msra.mxu0 %v103
    %255 = vmatpush.msra.mxu0 %v102
    %256 = vmatpush.msra.mxu0 %v101
    %257 = vmatpush.msra.mxu0 %v100
    %258 = vmatpush.msra.mxu0 %v99
    %259 = vmatpush.msra.mxu0 %v98
    %260 = vmatpush.msra.mxu0 %v97
    %261 = vmatpush.msra.mxu0 %v96
    %262 = vmatpush.msra.mxu0 %v95
    %263 = vmatpush.msra.mxu0 %v94
    %264 = vmatpush.msra.mxu0 %v93
    %265 = vmatmul.f32.gmra.mxu0 %v91
    %v266 = vpop.f32.mrf.mxu0
    %v267 = vadd.f32 %v247, %v266
    %268 = vdwg.mxu0
    %269 = vmatpush.msra.mxu0 %v124
    %270 = vmatpush.msra.mxu0 %v123
    %271 = vmatpush.msra.mxu0 %v122
    %272 = vmatpush.msra.mxu0 %v121
    %273 = vmatpush.msra.mxu0 %v120
    %274 = vmatpush.msra.mxu0 %v119
    %275 = vmatpush.msra.mxu0 %v118
    %276 = vmatpush.msra.mxu0 %v117
    %277 = vmatpush.msra.mxu0 %v116
    %278 = vmatpush.msra.mxu0 %v115
    %279 = vmatpush.msra.mxu0 %v114
    %280 = vmatpush.msra.mxu0 %v113
    %281 = vmatpush.msra.mxu0 %v112
    %282 = vmatpush.msra.mxu0 %v111
    %283 = vmatpush.msra.mxu0 %v110
    %284 = vmatpush.msra.mxu0 %v109
    %285 = vmatmul.f32.gmra.mxu0 %v92
    %v286 = vpop.f32.mrf.mxu0
    %v287 = vadd.f32 %v267, %v286
    %288 = vdwg.mxu0
    %s289 = scalar_lea.vmem %s3, 128
    %v290 = vld [vmem:[%s289] sm:$0xff]
    %v291 = vld [vmem:[%s289 + $0x8] sm:$0xff]
    %v292 = vld [vmem:[%s289 + $0x10] sm:$0xff]
    %v293 = vld [vmem:[%s289 + $0x18] sm:$0xff]
    %v294 = vld [vmem:[%s289 + $0x20] sm:$0xff]
    %v295 = vld [vmem:[%s289 + $0x28] sm:$0xff]
    %v296 = vld [vmem:[%s289 + $0x30] sm:$0xff]
    %v297 = vld [vmem:[%s289 + $0x38] sm:$0xff]
    %298 = vmatpush.msra.mxu0 0.0
    %299 = vmatpush.msra.mxu0 0.0
    %300 = vmatpush.msra.mxu0 0.0
    %301 = vmatpush.msra.mxu0 0.0
    %302 = vmatpush.msra.mxu0 0.0
    %303 = vmatpush.msra.mxu0 0.0
    %304 = vmatpush.msra.mxu0 0.0
    %305 = vmatpush.msra.mxu0 0.0
    %306 = vmatpush.msra.mxu0 0.0
    %307 = vmatpush.msra.mxu0 0.0
    %308 = vmatpush.msra.mxu0 0.0
    %309 = vmatpush.msra.mxu0 0.0
    %310 = vmatpush.msra.mxu0 %v296
    %311 = vmatpush.msra.mxu0 %v294
    %312 = vmatpush.msra.mxu0 %v292
    %313 = vmatpush.msra.mxu0 %v290
    %314 = vmatmul.f32.gmra.mxu0 %v49
    %v315 = vpop.f32.mrf.mxu0
    %v316 = vadd.f32 0.0, %v315
    %317 = vdwg.mxu0
    %318 = vmatpush.msra.mxu0 0.0
    %319 = vmatpush.msra.mxu0 0.0
    %320 = vmatpush.msra.mxu0 0.0
    %321 = vmatpush.msra.mxu0 0.0
    %322 = vmatpush.msra.mxu0 0.0
    %323 = vmatpush.msra.mxu0 0.0
    %324 = vmatpush.msra.mxu0 0.0
    %325 = vmatpush.msra.mxu0 0.0
    %326 = vmatpush.msra.mxu0 0.0
    %327 = vmatpush.msra.mxu0 0.0
    %328 = vmatpush.msra.mxu0 0.0
    %329 = vmatpush.msra.mxu0 0.0
    %330 = vmatpush.msra.mxu0 %v297
    %331 = vmatpush.msra.mxu0 %v295
    %332 = vmatpush.msra.mxu0 %v293
    %333 = vmatpush.msra.mxu0 %v291
    %334 = vmatmul.f32.gmra.mxu0 %v49
    %v335 = vpop.f32.mrf.mxu0
    %v336 = vadd.f32 0.0, %v335
    %337 = vdwg.mxu0
    %v338 = vmul.f32 %v37, %v316
    %v339 = vmul.f32 %v38, %v336
    %s340 = scalar_lea.vmem %s4, 512
    %v341 = vld [vmem:[%s340] sm:$0xff]
    %v342 = vld [vmem:[%s340 + $0x8] sm:$0xff]
    %v343 = vld [vmem:[%s340 + $0x10] sm:$0xff]
    %v344 = vld [vmem:[%s340 + $0x18] sm:$0xff]
    %v345 = vld [vmem:[%s340 + $0x20] sm:$0xff]
    %v346 = vld [vmem:[%s340 + $0x28] sm:$0xff]
    %v347 = vld [vmem:[%s340 + $0x30] sm:$0xff]
    %v348 = vld [vmem:[%s340 + $0x38] sm:$0xff]
    %v349 = vld [vmem:[%s340 + $0x40] sm:$0xff]
    %v350 = vld [vmem:[%s340 + $0x48] sm:$0xff]
    %v351 = vld [vmem:[%s340 + $0x50] sm:$0xff]
    %v352 = vld [vmem:[%s340 + $0x58] sm:$0xff]
    %v353 = vld [vmem:[%s340 + $0x60] sm:$0xff]
    %v354 = vld [vmem:[%s340 + $0x68] sm:$0xff]
    %v355 = vld [vmem:[%s340 + $0x70] sm:$0xff]
    %v356 = vld [vmem:[%s340 + $0x78] sm:$0xff]
    %v357 = vld [vmem:[%s340 + $0x80] sm:$0xff]
    %v358 = vld [vmem:[%s340 + $0x88] sm:$0xff]
    %v359 = vld [vmem:[%s340 + $0x90] sm:$0xff]
    %v360 = vld [vmem:[%s340 + $0x98] sm:$0xff]
    %v361 = vld [vmem:[%s340 + $0xa0] sm:$0xff]
    %v362 = vld [vmem:[%s340 + $0xa8] sm:$0xff]
    %v363 = vld [vmem:[%s340 + $0xb0] sm:$0xff]
    %v364 = vld [vmem:[%s340 + $0xb8] sm:$0xff]
    %v365 = vld [vmem:[%s340 + $0xc0] sm:$0xff]
    %v366 = vld [vmem:[%s340 + $0xc8] sm:$0xff]
    %v367 = vld [vmem:[%s340 + $0xd0] sm:$0xff]
    %v368 = vld [vmem:[%s340 + $0xd8] sm:$0xff]
    %v369 = vld [vmem:[%s340 + $0xe0] sm:$0xff]
    %v370 = vld [vmem:[%s340 + $0xe8] sm:$0xff]
    %v371 = vld [vmem:[%s340 + $0xf0] sm:$0xff]
    %v372 = vld [vmem:[%s340 + $0xf8] sm:$0xff]
    %373 = vmatpush.msra.mxu0 %v356
    %374 = vmatpush.msra.mxu0 %v355
    %375 = vmatpush.msra.mxu0 %v354
    %376 = vmatpush.msra.mxu0 %v353
    %377 = vmatpush.msra.mxu0 %v352
    %378 = vmatpush.msra.mxu0 %v351
    %379 = vmatpush.msra.mxu0 %v350
    %380 = vmatpush.msra.mxu0 %v349
    %381 = vmatpush.msra.mxu0 %v348
    %382 = vmatpush.msra.mxu0 %v347
    %383 = vmatpush.msra.mxu0 %v346
    %384 = vmatpush.msra.mxu0 %v345
    %385 = vmatpush.msra.mxu0 %v344
    %386 = vmatpush.msra.mxu0 %v343
    %387 = vmatpush.msra.mxu0 %v342
    %388 = vmatpush.msra.mxu0 %v341
    %389 = vmatmul.f32.gmra.mxu0 %v338
    %v390 = vpop.f32.mrf.mxu0
    %v391 = vadd.f32 0.0, %v390
    %392 = vdwg.mxu0
    %393 = vmatpush.msra.mxu0 %v372
    %394 = vmatpush.msra.mxu0 %v371
    %395 = vmatpush.msra.mxu0 %v370
    %396 = vmatpush.msra.mxu0 %v369
    %397 = vmatpush.msra.mxu0 %v368
    %398 = vmatpush.msra.mxu0 %v367
    %399 = vmatpush.msra.mxu0 %v366
    %400 = vmatpush.msra.mxu0 %v365
    %401 = vmatpush.msra.mxu0 %v364
    %402 = vmatpush.msra.mxu0 %v363
    %403 = vmatpush.msra.mxu0 %v362
    %404 = vmatpush.msra.mxu0 %v361
    %405 = vmatpush.msra.mxu0 %v360
    %406 = vmatpush.msra.mxu0 %v359
    %407 = vmatpush.msra.mxu0 %v358
    %408 = vmatpush.msra.mxu0 %v357
    %409 = vmatmul.f32.gmra.mxu0 %v339
    %v410 = vpop.f32.mrf.mxu0
    %v411 = vadd.f32 %v391, %v410
    %412 = vdwg.mxu0
    %v413 = vadd.f32 %v287, %v411
    %s414 = scalar_lea.vmem %s3, 192
    %v415 = vld [vmem:[%s414] sm:$0xff]
    %v416 = vld [vmem:[%s414 + $0x8] sm:$0xff]
    %v417 = vld [vmem:[%s414 + $0x10] sm:$0xff]
    %v418 = vld [vmem:[%s414 + $0x18] sm:$0xff]
    %v419 = vld [vmem:[%s414 + $0x20] sm:$0xff]
    %v420 = vld [vmem:[%s414 + $0x28] sm:$0xff]
    %v421 = vld [vmem:[%s414 + $0x30] sm:$0xff]
    %v422 = vld [vmem:[%s414 + $0x38] sm:$0xff]
    %423 = vmatpush.msra.mxu0 0.0
    %424 = vmatpush.msra.mxu0 0.0
    %425 = vmatpush.msra.mxu0 0.0
    %426 = vmatpush.msra.mxu0 0.0
    %427 = vmatpush.msra.mxu0 0.0
    %428 = vmatpush.msra.mxu0 0.0
    %429 = vmatpush.msra.mxu0 0.0
    %430 = vmatpush.msra.mxu0 0.0
    %431 = vmatpush.msra.mxu0 0.0
    %432 = vmatpush.msra.mxu0 0.0
    %433 = vmatpush.msra.mxu0 0.0
    %434 = vmatpush.msra.mxu0 0.0
    %435 = vmatpush.msra.mxu0 %v421
    %436 = vmatpush.msra.mxu0 %v419
    %437 = vmatpush.msra.mxu0 %v417
    %438 = vmatpush.msra.mxu0 %v415
    %439 = vmatmul.f32.gmra.mxu0 %v49
    %v440 = vpop.f32.mrf.mxu0
    %v441 = vadd.f32 0.0, %v440
    %442 = vdwg.mxu0
    %443 = vmatpush.msra.mxu0 0.0
    %444 = vmatpush.msra.mxu0 0.0
    %445 = vmatpush.msra.mxu0 0.0
    %446 = vmatpush.msra.mxu0 0.0
    %447 = vmatpush.msra.mxu0 0.0
    %448 = vmatpush.msra.mxu0 0.0
    %449 = vmatpush.msra.mxu0 0.0
    %450 = vmatpush.msra.mxu0 0.0
    %451 = vmatpush.msra.mxu0 0.0
    %452 = vmatpush.msra.mxu0 0.0
    %453 = vmatpush.msra.mxu0 0.0
    %454 = vmatpush.msra.mxu0 0.0
    %455 = vmatpush.msra.mxu0 %v422
    %456 = vmatpush.msra.mxu0 %v420
    %457 = vmatpush.msra.mxu0 %v418
    %458 = vmatpush.msra.mxu0 %v416
    %459 = vmatmul.f32.gmra.mxu0 %v49
    %v460 = vpop.f32.mrf.mxu0
    %v461 = vadd.f32 0.0, %v460
    %462 = vdwg.mxu0
    %v463 = vmul.f32 %v37, %v441
    %v464 = vmul.f32 %v38, %v461
    %s465 = scalar_lea.vmem %s4, 768
    %v466 = vld [vmem:[%s465] sm:$0xff]
    %v467 = vld [vmem:[%s465 + $0x8] sm:$0xff]
    %v468 = vld [vmem:[%s465 + $0x10] sm:$0xff]
    %v469 = vld [vmem:[%s465 + $0x18] sm:$0xff]
    %v470 = vld [vmem:[%s465 + $0x20] sm:$0xff]
    %v471 = vld [vmem:[%s465 + $0x28] sm:$0xff]
    %v472 = vld [vmem:[%s465 + $0x30] sm:$0xff]
    %v473 = vld [vmem:[%s465 + $0x38] sm:$0xff]
    %v474 = vld [vmem:[%s465 + $0x40] sm:$0xff]
    %v475 = vld [vmem:[%s465 + $0x48] sm:$0xff]
    %v476 = vld [vmem:[%s465 + $0x50] sm:$0xff]
    %v477 = vld [vmem:[%s465 + $0x58] sm:$0xff]
    %v478 = vld [vmem:[%s465 + $0x60] sm:$0xff]
    %v479 = vld [vmem:[%s465 + $0x68] sm:$0xff]
    %v480 = vld [vmem:[%s465 + $0x70] sm:$0xff]
    %v481 = vld [vmem:[%s465 + $0x78] sm:$0xff]
    %v482 = vld [vmem:[%s465 + $0x80] sm:$0xff]
    %v483 = vld [vmem:[%s465 + $0x88] sm:$0xff]
    %v484 = vld [vmem:[%s465 + $0x90] sm:$0xff]
    %v485 = vld [vmem:[%s465 + $0x98] sm:$0xff]
    %v486 = vld [vmem:[%s465 + $0xa0] sm:$0xff]
    %v487 = vld [vmem:[%s465 + $0xa8] sm:$0xff]
    %v488 = vld [vmem:[%s465 + $0xb0] sm:$0xff]
    %v489 = vld [vmem:[%s465 + $0xb8] sm:$0xff]
    %v490 = vld [vmem:[%s465 + $0xc0] sm:$0xff]
    %v491 = vld [vmem:[%s465 + $0xc8] sm:$0xff]
    %v492 = vld [vmem:[%s465 + $0xd0] sm:$0xff]
    %v493 = vld [vmem:[%s465 + $0xd8] sm:$0xff]
    %v494 = vld [vmem:[%s465 + $0xe0] sm:$0xff]
    %v495 = vld [vmem:[%s465 + $0xe8] sm:$0xff]
    %v496 = vld [vmem:[%s465 + $0xf0] sm:$0xff]
    %v497 = vld [vmem:[%s465 + $0xf8] sm:$0xff]
    %498 = vmatpush.msra.mxu0 %v481
    %499 = vmatpush.msra.mxu0 %v480
    %500 = vmatpush.msra.mxu0 %v479
    %501 = vmatpush.msra.mxu0 %v478
    %502 = vmatpush.msra.mxu0 %v477
    %503 = vmatpush.msra.mxu0 %v476
    %504 = vmatpush.msra.mxu0 %v475
    %505 = vmatpush.msra.mxu0 %v474
    %506 = vmatpush.msra.mxu0 %v473
    %507 = vmatpush.msra.mxu0 %v472
    %508 = vmatpush.msra.mxu0 %v471
    %509 = vmatpush.msra.mxu0 %v470
    %510 = vmatpush.msra.mxu0 %v469
    %511 = vmatpush.msra.mxu0 %v468
    %512 = vmatpush.msra.mxu0 %v467
    %513 = vmatpush.msra.mxu0 %v466
    %514 = vmatmul.f32.gmra.mxu0 %v463
    %v515 = vpop.f32.mrf.mxu0
    %v516 = vadd.f32 0.0, %v515
    %517 = vdwg.mxu0
    %518 = vmatpush.msra.mxu0 %v497
    %519 = vmatpush.msra.mxu0 %v496
    %520 = vmatpush.msra.mxu0 %v495
    %521 = vmatpush.msra.mxu0 %v494
    %522 = vmatpush.msra.mxu0 %v493
    %523 = vmatpush.msra.mxu0 %v492
    %524 = vmatpush.msra.mxu0 %v491
    %525 = vmatpush.msra.mxu0 %v490
    %526 = vmatpush.msra.mxu0 %v489
    %527 = vmatpush.msra.mxu0 %v488
    %528 = vmatpush.msra.mxu0 %v487
    %529 = vmatpush.msra.mxu0 %v486
    %530 = vmatpush.msra.mxu0 %v485
    %531 = vmatpush.msra.mxu0 %v484
    %532 = vmatpush.msra.mxu0 %v483
    %533 = vmatpush.msra.mxu0 %v482
    %534 = vmatmul.f32.gmra.mxu0 %v464
    %v535 = vpop.f32.mrf.mxu0
    %v536 = vadd.f32 %v516, %v535
    %537 = vdwg.mxu0
    %v538 = vadd.f32 %v413, %v536
    %v539 = vld [vmem:[%s8] sm:$0x1]
    %v541 = vperm.slane %v539, 0
    %v543 = vadd.f32 %v538, %v541
    %v544 = vsel %vm47, %v543, -inf
    %545 = vmax.xlane.f32.xlu0 %v544
    %v546 = vpop.xlane.xlu0 %545
    %v547 = vsub.f32 %v543, %v546
    %v548 = vmul.f32 %v547, 1.442695
    %v549 = vpow.pop %v548
    %v550 = vld [vmem:[%s5] sm:$0xff]
    %v551 = vld [vmem:[%s5 + $0x8] sm:$0xff]
    %v552 = vld [vmem:[%s5 + $0x10] sm:$0xff]
    %v553 = vld [vmem:[%s5 + $0x18] sm:$0xff]
    %v555 = vsel %vm47, %v549, 0
    %557 = vmatpush.msra.mxu0 0.0
    %558 = vmatpush.msra.mxu0 0.0
    %559 = vmatpush.msra.mxu0 0.0
    %560 = vmatpush.msra.mxu0 0.0
    %561 = vmatpush.msra.mxu0 0.0
    %562 = vmatpush.msra.mxu0 0.0
    %563 = vmatpush.msra.mxu0 0.0
    %564 = vmatpush.msra.mxu0 0.0
    %565 = vmatpush.msra.mxu0 0.0
    %566 = vmatpush.msra.mxu0 0.0
    %567 = vmatpush.msra.mxu0 0.0
    %568 = vmatpush.msra.mxu0 0.0
    %569 = vmatpush.msra.mxu0 %v553
    %570 = vmatpush.msra.mxu0 %v552
    %571 = vmatpush.msra.mxu0 %v551
    %572 = vmatpush.msra.mxu0 %v550
    %573 = vmatmul.f32.gmra.mxu0 %v555
    %v574 = vpop.f32.mrf.mxu0
    %v575 = vadd.f32 0.0, %v574
    %576 = vdwg.mxu0
    %v577 = vrcp.pop %v575
    %v578 = vmul.f32 %v575, %v577
    %v579 = vsub.f32 1.0, %v578
    %v580 = vmul.f32 %v577, %v579
    %v581 = vadd.f32 %v577, %v580
    %vm582 = vweird.f32 %v575
    %vm583 = vweird.f32 %v577
    %vm584 = vmor %vm582, %vm583
    %v585 = vsel %vm584, %v577, %v581
    %v586 = vand.u32 2147483647, %v575
    %vm587 = vcmp.eq.f32.partialorder %v586, 8.507059e+37
    %v588 = vand.u32 %v575, 2147483648
    %v589 = vor.u32 1.1754944e-38, %v588
    %v590 = vsel %vm587, %v589, %v585
    %v591 = vmul.f32 %v549, %v590
    %592 = vst.msk [vmem:[#allocation2] sm:$0xff] %vm47, %v591
    %v593 = vld [vmem:[%s6] sm:$0xff]
    %v594 = vld [vmem:[%s6 + $0x8] sm:$0xff]
    %v595 = vld [vmem:[%s6 + $0x10] sm:$0xff]
    %v596 = vld [vmem:[%s6 + $0x18] sm:$0xff]
    %v598 = vsel %vm47, %v591, 0
    %600 = vmatpush.msra.mxu0 0.0
    %601 = vmatpush.msra.mxu0 0.0
    %602 = vmatpush.msra.mxu0 0.0
    %603 = vmatpush.msra.mxu0 0.0
    %604 = vmatpush.msra.mxu0 0.0
    %605 = vmatpush.msra.mxu0 0.0
    %606 = vmatpush.msra.mxu0 0.0
    %607 = vmatpush.msra.mxu0 0.0
    %608 = vmatpush.msra.mxu0 0.0
    %609 = vmatpush.msra.mxu0 0.0
    %610 = vmatpush.msra.mxu0 0.0
    %611 = vmatpush.msra.mxu0 0.0
    %612 = vmatpush.msra.mxu0 %v596
    %613 = vmatpush.msra.mxu0 %v595
    %614 = vmatpush.msra.mxu0 %v594
    %615 = vmatpush.msra.mxu0 %v593
    %616 = vmatmul.f32.gmra.mxu0 %v598
    %v617 = vpop.f32.mrf.mxu0
    %v618 = vadd.f32 0.0, %v617
    %619 = vdwg.mxu0
    %v620 = vld [vmem:[%s2] sm:$0xff]
    %v621 = vmul.f32 %v618, %v620
    %v622 = vld [vmem:[%s7] sm:$0xff]
    %v623 = vld [vmem:[%s7 + $0x8] sm:$0xff]
    %v624 = vld [vmem:[%s7 + $0x10] sm:$0xff]
    %v625 = vld [vmem:[%s7 + $0x18] sm:$0xff]
    %v626 = vld [vmem:[%s7 + $0x20] sm:$0xff]
    %v627 = vld [vmem:[%s7 + $0x28] sm:$0xff]
    %v628 = vld [vmem:[%s7 + $0x30] sm:$0xff]
    %v629 = vld [vmem:[%s7 + $0x38] sm:$0xff]
    %v630 = vld [vmem:[%s7 + $0x40] sm:$0xff]
    %v631 = vld [vmem:[%s7 + $0x48] sm:$0xff]
    %v632 = vld [vmem:[%s7 + $0x50] sm:$0xff]
    %v633 = vld [vmem:[%s7 + $0x58] sm:$0xff]
    %v634 = vld [vmem:[%s7 + $0x60] sm:$0xff]
    %v635 = vld [vmem:[%s7 + $0x68] sm:$0xff]
    %v636 = vld [vmem:[%s7 + $0x70] sm:$0xff]
    %v637 = vld [vmem:[%s7 + $0x78] sm:$0xff]
    %638 = vmatpush.msra.mxu0 %v637
    %639 = vmatpush.msra.mxu0 %v636
    %640 = vmatpush.msra.mxu0 %v635
    %641 = vmatpush.msra.mxu0 %v634
    %642 = vmatpush.msra.mxu0 %v633
    %643 = vmatpush.msra.mxu0 %v632
    %644 = vmatpush.msra.mxu0 %v631
    %645 = vmatpush.msra.mxu0 %v630
    %646 = vmatpush.msra.mxu0 %v629
    %647 = vmatpush.msra.mxu0 %v628
    %648 = vmatpush.msra.mxu0 %v627
    %649 = vmatpush.msra.mxu0 %v626
    %650 = vmatpush.msra.mxu0 %v625
    %651 = vmatpush.msra.mxu0 %v624
    %652 = vmatpush.msra.mxu0 %v623
    %653 = vmatpush.msra.mxu0 %v622
    %654 = vmatmul.f32.gmra.mxu0 %v621
    %v655 = vpop.f32.mrf.mxu0
    %v656 = vadd.f32 0.0, %v655
    %657 = vdwg.mxu0
    %vm658 = vcmask 130048
    %659 = vst.msk [vmem:[#allocation4] sm:$0xff] %vm658, %v656
    // Predicated region
    $region38: #{tpu_custom_call.1} parent=1 // pred_check
      _
    $region39: #{tpu_custom_call.1} parent=1 // pred_check_branch
      %661 = sbr.rel (0) target = $region41
    $region40: #{tpu_custom_call.1} parent=1 // pred_region
      %663 = vsyncadd [#allocation3], 0
      %s665 = sshll.u32 [#allocation2], 4
      %s666 = int_to_ptr.vmem [resolvable:$true] %s665
      %s667 = sshll.u32 %s9, 4
      %s668 = int_to_ptr.hbm [resolvable:$true] %s667
      %670 = dma.vmem_to_hbm [thread:$0]  %s666, 128, %s668, [#allocation3]
    $region41: #{tpu_custom_call.1} parent=1 // pred_fallthru
      _
    // Predicated region
    $region42: #{tpu_custom_call.1} parent=1 // pred_check
      _
    $region43: #{tpu_custom_call.1} parent=1 // pred_check_branch
      %672 = sbr.rel (0) target = $region45
    $region44: #{tpu_custom_call.1} parent=1 // pred_region
      %674 = vsyncadd [#allocation5], 0
      %s676 = sshll.u32 [#allocation4], 4
      %s677 = int_to_ptr.vmem [resolvable:$true] %s676
      %s678 = sshll.u32 %s10, 4
      %s679 = int_to_ptr.hbm [resolvable:$true] %s678
      %681 = dma.vmem_to_hbm [thread:$0]  %s677, 128, %s679, [#allocation5]
    $region45: #{tpu_custom_call.1} parent=1 // pred_fallthru
      _
    // Predicated region
    $region46: #{tpu_custom_call.1} parent=1 // pred_check
      _
    $region47: #{tpu_custom_call.1} parent=1 // pred_check_branch
      %683 = sbr.rel (0) target = $region49
    $region48: #{tpu_custom_call.1} parent=1 // pred_region
      %685 = dma.done [#allocation3], 128
    $region49: #{tpu_custom_call.1} parent=1 // pred_fallthru
      _
    // Predicated region
    $region50: #{tpu_custom_call.1} parent=1 // pred_check
      _
    $region51: #{tpu_custom_call.1} parent=1 // pred_check_branch
      %687 = sbr.rel (0) target = $region53
    $region52: #{tpu_custom_call.1} parent=1 // pred_region
      %689 = dma.done [#allocation5], 128
    $region53: #{tpu_custom_call.1} parent=1 // pred_fallthru
      _
    %690 = vsyncpa [#allocation3], 1
    %691 = vsyncpa [#allocation5], 1

</llo_original>
